<compile_context>
chip_gen: v6e
topology: v6e:2x2x1
jax: 0.10.0
libtpu: 0.0.40
codegen_flags: <defaults>
</compile_context>

<pallas_src>
import jax
import jax.numpy as jnp
from jax.experimental import pallas as pl
from jax.experimental.pallas import tpu as pltpu


def _round_up(n, m):
    return ((n + m - 1) // m) * m


def _mlp_kernel(x1_ref, x2_ref, w1_ref, b1_ref, w2h_ref, w2x_ref, b2_ref, o_ref):
    # First linear + ReLU (MXU matmul, f32 accumulation).
    h = jnp.dot(x1_ref[...], w1_ref[...], preferred_element_type=jnp.float32)
    h = jnp.maximum(h + b1_ref[...], 0.0)

    # Second linear. concat([h, x2]) @ W2^T == h @ W2h + x2 * w2x:
    #   - h @ W2h goes through the MXU (output already zero-padded to 128 lanes)
    #   - the x2 term is a rank-1 outer product -> plain VPU broadcast multiply.
    logits = jnp.dot(h.astype(w2h_ref.dtype), w2h_ref[...],
                     preferred_element_type=jnp.float32)
    logits = logits + x2_ref[...] * w2x_ref[...]        # [tb,1] * [1,128] -> [tb,128]
    logits = logits + b2_ref[...]

    # Sigmoid: exp on the EUP, reciprocal for 1/(1+e).
    e = jnp.exp(-logits)
    o_ref[...] = pl.reciprocal(1.0 + e, approx=False).astype(o_ref.dtype)


def classification_forward(x1, x2, w1, b1, w2, b2, *, block_b=256,
                           compute_dtype=jnp.float32):
    """x1: [B, D], x2: [B, 1]; w1: [2D, D], b1: [2D], w2: [4, 2D+1], b2: [4]."""
    B, D = x1.shape
    H = 2 * D
    n_out = w2.shape[0]          # 4
    NOUT = 128                   # lane-dense padded output width

    # ---- weight prep (plain JAX glue, done once per call) ----
    w1_t = jnp.transpose(w1).astype(compute_dtype)            # [D, H]
    b1_r = b1.reshape(1, H).astype(jnp.float32)                # [1, H]

    w2h = jnp.transpose(w2[:, :H]).astype(compute_dtype)       # [H, n_out]
    w2x = w2[:, H].reshape(1, n_out).astype(jnp.float32)        # [1, n_out]
    b2_r = b2.reshape(1, n_out).astype(jnp.float32)             # [1, n_out]

    # Zero-pad the output dimension to 128 lanes (lane-dense stores).
    w2h_p = jnp.zeros((H, NOUT), compute_dtype).at[:, :n_out].set(w2h)
    w2x_p = jnp.zeros((1, NOUT), jnp.float32).at[:, :n_out].set(w2x)
    b2_p = jnp.zeros((1, NOUT), jnp.float32).at[:, :n_out].set(b2_r)

    # ---- batch tiling (tile multiple of 8, pad batch to a tile multiple) ----
    tb = min(block_b, _round_up(B, 8))
    Bp = _round_up(B, tb)
    x1_p = x1.astype(compute_dtype)
    x2_p = x2.astype(jnp.float32)
    if Bp != B:
        x1_p = jnp.pad(x1_p, ((0, Bp - B), (0, 0)))
        x2_p = jnp.pad(x2_p, ((0, Bp - B), (0, 0)))

    row_spec = lambda shape: pl.BlockSpec(shape, lambda i: (i, 0))   # per-batch-tile
    fixed = lambda shape: pl.BlockSpec(shape, lambda i: (0, 0))      # VMEM-resident

    out = pl.pallas_call(
        _mlp_kernel,
        out_shape=jax.ShapeDtypeStruct((Bp, NOUT), jnp.float32),
        grid=(Bp // tb,),
        in_specs=[
            row_spec((tb, D)),        # x1 tile
            row_spec((tb, 1)),        # x2 tile
            fixed((D, H)),            # w1^T      (resident across grid steps)
            fixed((1, H)),            # b1
            fixed((H, NOUT)),         # w2h (padded to 128 output lanes)
            fixed((1, NOUT)),         # w2x (padded)
            fixed((1, NOUT)),         # b2  (padded)
        ],
        out_specs=row_spec((tb, NOUT)),
        compiler_params=pltpu.CompilerParams(
            dimension_semantics=("parallel",)),
    )(x1_p, x2_p, w1_t, b1_r, w2h_p, w2x_p, b2_p)

    return out[:B, :n_out]


def _reference(x1, x2, w1, b1, w2, b2):
    h = jnp.maximum(x1 @ w1.T + b1, 0.0)
    cat = jnp.concatenate([h, x2], axis=1)
    return jax.nn.sigmoid(cat @ w2.T + b2)


if __name__ == "__main__":
    # positive_data.shape[1] = 16  ->  input_dim = 32
    B = 16
    D = 32          # input_dim
    H = 2 * D       # hidden width

    key = jax.random.PRNGKey(0)
    k1, k2, k3, k4, k5, k6 = jax.random.split(key, 6)

    # Deterministic PyTorch-style uniform(-1/sqrt(fan_in), 1/sqrt(fan_in)) init.
    lim1 = 1.0 / jnp.sqrt(jnp.float32(D))
    lim2 = 1.0 / jnp.sqrt(jnp.float32(H + 1))
    w1 = jax.random.uniform(k1, (H, D), jnp.float32, -lim1, lim1)
    b1 = jax.random.uniform(k2, (H,), jnp.float32, -lim1, lim1)
    w2 = jax.random.uniform(k3, (4, H + 1), jnp.float32, -lim2, lim2)
    b2 = jax.random.uniform(k4, (4,), jnp.float32, -lim2, lim2)

    x1 = jax.random.normal(k5, (B, D), jnp.float32)
    x2 = jax.random.normal(k6, (B, 1), jnp.float32)

    # block_b=8 -> a 2-step batch grid at this toy size, exercising resident
    # weights + parallel batch axis.  Production sizes would use block_b=256+.
    y = classification_forward(x1, x2, w1, b1, w2, b2, block_b=8)
    y = jax.block_until_ready(y)

    y_ref = _reference(x1, x2, w1, b1, w2, b2)
    assert y.shape == (B, 4)
    assert jnp.allclose(y, y_ref, atol=1e-5, rtol=1e-5), "mismatch vs reference"

    print("KERNEL_OK")
</pallas_src>

<mosaic_0001>
module attributes {stable_mosaic.version = 11 : i64} {
  func.func @_mlp_kernel(%arg0: i32, %arg1: memref<8x32xf32, #tpu.memory_space<vmem>>, %arg2: memref<8x1xf32, #tpu.memory_space<vmem>>, %arg3: memref<32x64xf32, #tpu.memory_space<vmem>>, %arg4: memref<1x64xf32, #tpu.memory_space<vmem>>, %arg5: memref<64x128xf32, #tpu.memory_space<vmem>>, %arg6: memref<1x128xf32, #tpu.memory_space<vmem>>, %arg7: memref<1x128xf32, #tpu.memory_space<vmem>>, %arg8: memref<8x128xf32, #tpu.memory_space<vmem>>) attributes {dimension_semantics = [#tpu.dimension_semantics<parallel>], iteration_bounds = array<i64: 2>, scalar_prefetch = 0 : i64, scratch_operands = 0 : i64, tpu.core_type = #tpu.core_type<tc>, window_params = [{transform_indices = @transform_0, window_bounds = array<i64: 8, 32>}, {transform_indices = @transform_1, window_bounds = array<i64: 8, 1>}, {pipeline_mode = #tpu.pipeline_mode<synchronous>, transform_indices = @transform_2, window_bounds = array<i64: 32, 64>}, {pipeline_mode = #tpu.pipeline_mode<synchronous>, transform_indices = @transform_3, window_bounds = array<i64: 1, 64>}, {pipeline_mode = #tpu.pipeline_mode<synchronous>, transform_indices = @transform_4, window_bounds = array<i64: 64, 128>}, {pipeline_mode = #tpu.pipeline_mode<synchronous>, transform_indices = @transform_5, window_bounds = array<i64: 1, 128>}, {pipeline_mode = #tpu.pipeline_mode<synchronous>, transform_indices = @transform_6, window_bounds = array<i64: 1, 128>}, {transform_indices = @transform_7, window_bounds = array<i64: 8, 128>}]} {
    %c0 = arith.constant 0 : index
    %c0_0 = arith.constant 0 : index
    %0 = vector.load %arg1[%c0, %c0_0] : memref<8x32xf32, #tpu.memory_space<vmem>>, vector<8x32xf32>
    %c0_1 = arith.constant 0 : index
    %c0_2 = arith.constant 0 : index
    %1 = vector.load %arg3[%c0_1, %c0_2] : memref<32x64xf32, #tpu.memory_space<vmem>>, vector<32x64xf32>
    %cst = arith.constant dense<0.000000e+00> : vector<8x64xf32>
    %2 = tpu.matmul %0, %1, %cst {dimension_numbers = #tpu.dot_dimension_numbers<[1], [0], [0], [1], [0, 0, 1, 1], [], []>} : vector<8x32xf32>, vector<32x64xf32>, vector<8x64xf32> -> vector<8x64xf32>
    %c0_3 = arith.constant 0 : index
    %c0_4 = arith.constant 0 : index
    %3 = vector.load %arg4[%c0_3, %c0_4] : memref<1x64xf32, #tpu.memory_space<vmem>>, vector<1x64xf32>
    %4 = vector.broadcast %3 : vector<1x64xf32> to vector<8x64xf32>
    %5 = arith.addf %2, %4 : vector<8x64xf32>
    %cst_5 = arith.constant 0.000000e+00 : f32
    %6 = vector.broadcast %cst_5 : f32 to vector<8x64xf32>
    %7 = arith.maximumf %5, %6 : vector<8x64xf32>
    %c0_6 = arith.constant 0 : index
    %c0_7 = arith.constant 0 : index
    %8 = vector.load %arg5[%c0_6, %c0_7] : memref<64x128xf32, #tpu.memory_space<vmem>>, vector<64x128xf32>
    %cst_8 = arith.constant dense<0.000000e+00> : vector<8x128xf32>
    %9 = tpu.matmul %7, %8, %cst_8 {dimension_numbers = #tpu.dot_dimension_numbers<[1], [0], [0], [1], [0, 0, 1, 1], [], []>} : vector<8x64xf32>, vector<64x128xf32>, vector<8x128xf32> -> vector<8x128xf32>
    %c0_9 = arith.constant 0 : index
    %c0_10 = arith.constant 0 : index
    %10 = vector.load %arg2[%c0_9, %c0_10] : memref<8x1xf32, #tpu.memory_space<vmem>>, vector<8x1xf32>
    %c0_11 = arith.constant 0 : index
    %c0_12 = arith.constant 0 : index
    %11 = vector.load %arg6[%c0_11, %c0_12] : memref<1x128xf32, #tpu.memory_space<vmem>>, vector<1x128xf32>
    %12 = vector.broadcast %10 : vector<8x1xf32> to vector<8x128xf32>
    %13 = vector.broadcast %11 : vector<1x128xf32> to vector<8x128xf32>
    %14 = arith.mulf %12, %13 : vector<8x128xf32>
    %15 = arith.addf %9, %14 : vector<8x128xf32>
    %c0_13 = arith.constant 0 : index
    %c0_14 = arith.constant 0 : index
    %16 = vector.load %arg7[%c0_13, %c0_14] : memref<1x128xf32, #tpu.memory_space<vmem>>, vector<1x128xf32>
    %17 = vector.broadcast %16 : vector<1x128xf32> to vector<8x128xf32>
    %18 = arith.addf %15, %17 : vector<8x128xf32>
    %cst_15 = arith.constant 0.000000e+00 : f32
    %19 = vector.broadcast %cst_15 : f32 to vector<8x128xf32>
    %20 = arith.subf %19, %18 : vector<8x128xf32>
    %21 = math.exp %20 : vector<8x128xf32>
    %cst_16 = arith.constant 1.000000e+00 : f32
    %22 = vector.broadcast %cst_16 : f32 to vector<8x128xf32>
    %23 = arith.addf %22, %21 : vector<8x128xf32>
    %24 = tpu.reciprocal %23 : vector<8x128xf32> -> vector<8x128xf32>
    %c0_17 = arith.constant 0 : index
    %c0_18 = arith.constant 0 : index
    %25 = vector.load %arg8[%c0_17, %c0_18] : memref<8x128xf32, #tpu.memory_space<vmem>>, vector<8x128xf32>
    tpu.vector_store %arg8[%c0_17, %c0_18], %24 {strides = array<i32>} : memref<8x128xf32, #tpu.memory_space<vmem>>, vector<8x128xf32>,
    return
  }
  func.func @transform_0(%arg0: i32) -> (i32, i32) {
    %c0_i32 = arith.constant 0 : i32
    %c0_i32_0 = arith.constant 0 : i32
    return %arg0, %c0_i32 : i32, i32
  }
  func.func @transform_1(%arg0: i32) -> (i32, i32) {
    %c0_i32 = arith.constant 0 : i32
    %c0_i32_0 = arith.constant 0 : i32
    return %arg0, %c0_i32 : i32, i32
  }
  func.func @transform_2(%arg0: i32) -> (i32, i32) {
    %c0_i32 = arith.constant 0 : i32
    %c0_i32_0 = arith.constant 0 : i32
    %c0_i32_1 = arith.constant 0 : i32
    return %c0_i32, %c0_i32_0 : i32, i32
  }
  func.func @transform_3(%arg0: i32) -> (i32, i32) {
    %c0_i32 = arith.constant 0 : i32
    %c0_i32_0 = arith.constant 0 : i32
    %c0_i32_1 = arith.constant 0 : i32
    return %c0_i32, %c0_i32_0 : i32, i32
  }
  func.func @transform_4(%arg0: i32) -> (i32, i32) {
    %c0_i32 = arith.constant 0 : i32
    %c0_i32_0 = arith.constant 0 : i32
    %c0_i32_1 = arith.constant 0 : i32
    return %c0_i32, %c0_i32_0 : i32, i32
  }
  func.func @transform_5(%arg0: i32) -> (i32, i32) {
    %c0_i32 = arith.constant 0 : i32
    %c0_i32_0 = arith.constant 0 : i32
    %c0_i32_1 = arith.constant 0 : i32
    return %c0_i32, %c0_i32_0 : i32, i32
  }
  func.func @transform_6(%arg0: i32) -> (i32, i32) {
    %c0_i32 = arith.constant 0 : i32
    %c0_i32_0 = arith.constant 0 : i32
    %c0_i32_1 = arith.constant 0 : i32
    return %c0_i32, %c0_i32_0 : i32, i32
  }
  func.func @transform_7(%arg0: i32) -> (i32, i32) {
    %c0_i32 = arith.constant 0 : i32
    %c0_i32_0 = arith.constant 0 : i32
    return %arg0, %c0_i32 : i32, i32
  }
}

</mosaic_0001>

<llo_original>
// kernel: tpu_custom_call.1
$region0: #{tpu_custom_call.1}
  #allocation0 [shape = 'u32[]', space=smem, size = 0x4, offset = 0x4, fixed_abs, tag = 'smem constant byte address 0x4 - core index']
  #allocation1 [shape = 'u32[144,128]{1,0:T(1,128)}', space=vmem, size = 0x12000, scoped, tag = 'internal scratch']
  %s0 = inlined_call_operand.vmem [shape: f32[16,32], index: 0, kind: input, shape index: {}]
  %s1 = inlined_call_operand.vmem [shape: f32[16,1], index: 1, kind: input, shape index: {}]
  %s2 = inlined_call_operand.hbm [shape: f32[32,64], index: 2, kind: input, shape index: {}]
  %s3 = inlined_call_operand.vmem [shape: f32[1,64], index: 3, kind: input, shape index: {}]
  %s4 = inlined_call_operand.hbm [shape: f32[64,128], index: 4, kind: input, shape index: {}]
  %s5 = inlined_call_operand.vmem [shape: f32[1,128], index: 5, kind: input, shape index: {}]
  %s6 = inlined_call_operand.vmem [shape: f32[1,128], index: 6, kind: input, shape index: {}]
  %s7 = inlined_call_operand.hbm [shape: f32[16,128], index: 7, kind: output, shape index: {}]
  %s8 = sld [smem:[#allocation0]]
  $region69: #{tpu_custom_call.1} parent=0
    _
  %s10 = ssub.s32 1, %s8
  %s11 = scalar_select 0, %s10, %s8
  $region1: #{tpu_custom_call.1} parent=0
    #allocation2 [shape = 'u8[16384]{0}', space=vmem, size = 0x4000, scoped, tag = 'input window, operand 2, single buffered']
    #allocation3 [shape = 's32[2]{0}', space=sflag, size = 0x8, scoped, tag = 'scoped memory for tpu_custom_call.1']
    #allocation4 [shape = 's32[2]{0}', space=sflag, size = 0x8, scoped, tag = 'scoped memory for tpu_custom_call.1']
    #allocation5 [shape = 'u8[32768]{0}', space=vmem, size = 0x8000, scoped, tag = 'input window, operand 4, single buffered']
    #allocation6 [shape = 's32[1]{0}', space=sflag, size = 0x4, scoped, tag = 'scoped memory for tpu_custom_call.1']
    #allocation7 [shape = 'u8[8192]{0}', space=vmem, size = 0x2000, scoped, tag = 'output window, operand 0']
    %12 = vsyncpa [#allocation3], 0
    %13 = vsyncpa [#allocation6], 0
    %14 = vsyncpa [#allocation4], 0
    %s15 = scalar_lea.sflag [#allocation4], 1
    %16 = vsyncpa %s15, 0
    loop: start=0, step=1, limit=4
    $region2: #{tpu_custom_call.1} parent=1 // loop_pre_header
      _
    $region3: #{tpu_custom_call.1} parent=1 // loop_header
      %s18 = sphi 0, %s22
      %p19 = scmp.ge.s32.totalorder %s18, 4
      %s28 = sphi 0, %s30
      %s31 = sphi 0, %s28
      %s32 = sphi 0, %s31
      %s48 = sphi 0, %s32
      %s54 = sphi 0, %s56
      %s57 = sphi 0, %s54
      %s58 = sphi 0, %s57
      %s74 = sphi 0, %s58
      %s78 = sphi 0, %s78
      %s80 = sphi 0, %s78
      %s81 = sphi 0, %s80
      %s95 = sphi 0, %s81
      %s99 = sphi 0, %s99
      %s101 = sphi 0, %s99
      %s102 = sphi 0, %s101
      %s116 = sphi 0, %s102
      %s120 = sphi 0, %s120
      %s122 = sphi 0, %s120
      %s123 = sphi 0, %s122
      %s137 = sphi 0, %s123
      %s141 = sphi 0, %s141
      %s143 = sphi 0, %s141
      %s144 = sphi 0, %s143
      %s158 = sphi 0, %s144
      %s162 = sphi 0, %s162
      %s164 = sphi 0, %s162
      %s165 = sphi 0, %s164
      %s179 = sphi 0, %s165
      %s185 = sphi 0, %s187
      %s188 = sphi 0, %s185
      %s189 = sphi 0, %s188
      %s205 = sphi 0, %s189
    $region4: #{tpu_custom_call.1} parent=1 // loop_header_branch
      %21 = sbr.rel (%p19) target = $region8
    $region5: #{tpu_custom_call.1} parent=1 // loop_body
      %s23 = ssub.s32 %s18, 1
      %s24 = ssub.s32 %s18, 2
      %s25 = sadd.s32 %s18, 1
      %s26 = ssub.s32 %s18, %s25
      %p27 = scmp.eq.s32.totalorder %s26, 0
      %s29 = sadd.s32 %s28, 1
      %s30 = scalar_select %p27, %s28, %s29
      %p33 = pneg %p27
      %p34 = scmp.eq.s32.totalorder %s18, 1
      %p35 = por %p33, %p34
      %p36 = scmp.ne.s32.totalorder %s28, %s31
      %p37 = scmp.eq.s32.totalorder %s18, 0
      %p38 = por %p36, %p37
      %p39 = scmp.ne.s32.totalorder %s28, %s31
      %p40 = scmp.eq.s32.totalorder %s23, 1
      %p41 = por %p39, %p40
      %p42 = scmp.ne.s32.totalorder %s31, %s32
      %p43 = scmp.eq.s32.totalorder %s23, 0
      %p44 = por %p42, %p43
      %p45 = scmp.ne.s32.totalorder %s31, %s32
      %p46 = scmp.eq.s32.totalorder %s24, 1
      %p47 = por %p45, %p46
      %p49 = scmp.ne.s32.totalorder %s32, %s48
      %p50 = scmp.eq.s32.totalorder %s24, 0
      %p51 = por %p49, %p50
      %s52 = ssub.s32 %s18, %s25
      %p53 = scmp.eq.s32.totalorder %s52, 0
      %s55 = sadd.s32 %s54, 1
      %s56 = scalar_select %p53, %s54, %s55
      %p59 = pneg %p53
      %p60 = scmp.eq.s32.totalorder %s18, 1
      %p61 = por %p59, %p60
      %p62 = scmp.ne.s32.totalorder %s54, %s57
      %p63 = scmp.eq.s32.totalorder %s18, 0
      %p64 = por %p62, %p63
      %p65 = scmp.ne.s32.totalorder %s54, %s57
      %p66 = scmp.eq.s32.totalorder %s23, 1
      %p67 = por %p65, %p66
      %p68 = scmp.ne.s32.totalorder %s57, %s58
      %p69 = scmp.eq.s32.totalorder %s23, 0
      %p70 = por %p68, %p69
      %p71 = scmp.ne.s32.totalorder %s57, %s58
      %p72 = scmp.eq.s32.totalorder %s24, 1
      %p73 = por %p71, %p72
      %p75 = scmp.ne.s32.totalorder %s58, %s74
      %p76 = scmp.eq.s32.totalorder %s24, 0
      %p77 = por %p75, %p76
      %s79 = sadd.s32 %s78, 1
      %p82 = scmp.eq.s32.totalorder %s18, 1
      %p83 = scmp.ne.s32.totalorder %s78, %s80
      %p84 = scmp.eq.s32.totalorder %s18, 0
      %p85 = por %p83, %p84
      %p86 = scmp.ne.s32.totalorder %s78, %s80
      %p87 = scmp.eq.s32.totalorder %s23, 1
      %p88 = por %p86, %p87
      %p89 = scmp.ne.s32.totalorder %s80, %s81
      %p90 = scmp.eq.s32.totalorder %s23, 0
      %p91 = por %p89, %p90
      %p92 = scmp.ne.s32.totalorder %s80, %s81
      %p93 = scmp.eq.s32.totalorder %s24, 1
      %p94 = por %p92, %p93
      %p96 = scmp.ne.s32.totalorder %s81, %s95
      %p97 = scmp.eq.s32.totalorder %s24, 0
      %p98 = por %p96, %p97
      %s100 = sadd.s32 %s99, 1
      %p103 = scmp.eq.s32.totalorder %s18, 1
      %p104 = scmp.ne.s32.totalorder %s99, %s101
      %p105 = scmp.eq.s32.totalorder %s18, 0
      %p106 = por %p104, %p105
      %p107 = scmp.ne.s32.totalorder %s99, %s101
      %p108 = scmp.eq.s32.totalorder %s23, 1
      %p109 = por %p107, %p108
      %p110 = scmp.ne.s32.totalorder %s101, %s102
      %p111 = scmp.eq.s32.totalorder %s23, 0
      %p112 = por %p110, %p111
      %p113 = scmp.ne.s32.totalorder %s101, %s102
      %p114 = scmp.eq.s32.totalorder %s24, 1
      %p115 = por %p113, %p114
      %p117 = scmp.ne.s32.totalorder %s102, %s116
      %p118 = scmp.eq.s32.totalorder %s24, 0
      %p119 = por %p117, %p118
      %s121 = sadd.s32 %s120, 1
      %p124 = scmp.eq.s32.totalorder %s18, 1
      %p125 = scmp.ne.s32.totalorder %s120, %s122
      %p126 = scmp.eq.s32.totalorder %s18, 0
      %p127 = por %p125, %p126
      %p128 = scmp.ne.s32.totalorder %s120, %s122
      %p129 = scmp.eq.s32.totalorder %s23, 1
      %p130 = por %p128, %p129
      %p131 = scmp.ne.s32.totalorder %s122, %s123
      %p132 = scmp.eq.s32.totalorder %s23, 0
      %p133 = por %p131, %p132
      %p134 = scmp.ne.s32.totalorder %s122, %s123
      %p135 = scmp.eq.s32.totalorder %s24, 1
      %p136 = por %p134, %p135
      %p138 = scmp.ne.s32.totalorder %s123, %s137
      %p139 = scmp.eq.s32.totalorder %s24, 0
      %p140 = por %p138, %p139
      %s142 = sadd.s32 %s141, 1
      %p145 = scmp.eq.s32.totalorder %s18, 1
      %p146 = scmp.ne.s32.totalorder %s141, %s143
      %p147 = scmp.eq.s32.totalorder %s18, 0
      %p148 = por %p146, %p147
      %p149 = scmp.ne.s32.totalorder %s141, %s143
      %p150 = scmp.eq.s32.totalorder %s23, 1
      %p151 = por %p149, %p150
      %p152 = scmp.ne.s32.totalorder %s143, %s144
      %p153 = scmp.eq.s32.totalorder %s23, 0
      %p154 = por %p152, %p153
      %p155 = scmp.ne.s32.totalorder %s143, %s144
      %p156 = scmp.eq.s32.totalorder %s24, 1
      %p157 = por %p155, %p156
      %p159 = scmp.ne.s32.totalorder %s144, %s158
      %p160 = scmp.eq.s32.totalorder %s24, 0
      %p161 = por %p159, %p160
      %s163 = sadd.s32 %s162, 1
      %p166 = scmp.eq.s32.totalorder %s18, 1
      %p167 = scmp.ne.s32.totalorder %s162, %s164
      %p168 = scmp.eq.s32.totalorder %s18, 0
      %p169 = por %p167, %p168
      %p170 = scmp.ne.s32.totalorder %s162, %s164
      %p171 = scmp.eq.s32.totalorder %s23, 1
      %p172 = por %p170, %p171
      %p173 = scmp.ne.s32.totalorder %s164, %s165
      %p174 = scmp.eq.s32.totalorder %s23, 0
      %p175 = por %p173, %p174
      %p176 = scmp.ne.s32.totalorder %s164, %s165
      %p177 = scmp.eq.s32.totalorder %s24, 1
      %p178 = por %p176, %p177
      %p180 = scmp.ne.s32.totalorder %s165, %s179
      %p181 = scmp.eq.s32.totalorder %s24, 0
      %p182 = por %p180, %p181
      %s183 = ssub.s32 %s18, %s25
      %p184 = scmp.eq.s32.totalorder %s183, 0
      %s186 = sadd.s32 %s185, 1
      %s187 = scalar_select %p184, %s185, %s186
      %p190 = pneg %p184
      %p191 = scmp.eq.s32.totalorder %s18, 1
      %p192 = por %p190, %p191
      %p193 = scmp.ne.s32.totalorder %s185, %s188
      %p194 = scmp.eq.s32.totalorder %s18, 0
      %p195 = por %p193, %p194
      %p196 = scmp.ne.s32.totalorder %s185, %s188
      %p197 = scmp.eq.s32.totalorder %s23, 1
      %p198 = por %p196, %p197
      %p199 = scmp.ne.s32.totalorder %s188, %s189
      %p200 = scmp.eq.s32.totalorder %s23, 0
      %p201 = por %p199, %p200
      %p202 = scmp.ne.s32.totalorder %s188, %s189
      %p203 = scmp.eq.s32.totalorder %s24, 1
      %p204 = por %p202, %p203
      %p206 = scmp.ne.s32.totalorder %s189, %s205
      %p207 = scmp.eq.s32.totalorder %s24, 0
      %p208 = por %p206, %p207
      %p209 = scmp.le.s32.totalorder 1, %s18
      %p210 = scmp.lt.s32.totalorder %s18, 3
      %p211 = pnand %p209, %p210
      %p212 = pneg %p211
      // Predicated region
      $region9: #{tpu_custom_call.1} parent=5 // pred_check
        _
      $region10: #{tpu_custom_call.1} parent=5 // pred_check_branch
        %214 = sbr.rel (%p211) target = $region12
      $region11: #{tpu_custom_call.1} parent=5 // pred_region
        %s215 = ssub.s32 %s18, 1
        // Predicated region
        $region13: #{tpu_custom_call.1} parent=11 // pred_check
          %p216 = pneg %p91
        $region14: #{tpu_custom_call.1} parent=11 // pred_check_branch
          %218 = sbr.rel (%p216) target = $region16
        $region15: #{tpu_custom_call.1} parent=11 // pred_region
          %s220 = ssub.s32 512, 512
          %221 = vsyncadd [#allocation3], %s220
          %s222 = sshll.u32 [#allocation2], 4
          %s223 = int_to_ptr.vmem [resolvable:$true] %s222
          %228 = dma.hbm_to_vmem [thread:$0]  %s2, 512, %s223, [#allocation3], 128, 128, 8
        $region16: #{tpu_custom_call.1} parent=11 // pred_fallthru
          _
        // Predicated region
        $region17: #{tpu_custom_call.1} parent=11 // pred_check
          %p229 = pneg %p112
        $region18: #{tpu_custom_call.1} parent=11 // pred_check_branch
          %231 = sbr.rel (%p229) target = $region20
        $region19: #{tpu_custom_call.1} parent=11 // pred_region
          _
        $region20: #{tpu_custom_call.1} parent=11 // pred_fallthru
          _
        // Predicated region
        $region21: #{tpu_custom_call.1} parent=11 // pred_check
          %p232 = pneg %p133
        $region22: #{tpu_custom_call.1} parent=11 // pred_check_branch
          %234 = sbr.rel (%p232) target = $region24
        $region23: #{tpu_custom_call.1} parent=11 // pred_region
          %s236 = ssub.s32 1024, 1024
          %237 = vsyncadd [#allocation6], %s236
          %s238 = sshll.u32 [#allocation5], 4
          %s239 = int_to_ptr.vmem [resolvable:$true] %s238
          %244 = dma.hbm_to_vmem [thread:$0]  %s4, 1024, %s239, [#allocation6], 128, 128, 8
        $region24: #{tpu_custom_call.1} parent=11 // pred_fallthru
          _
        // Predicated region
        $region25: #{tpu_custom_call.1} parent=11 // pred_check
          %p245 = pneg %p154
        $region26: #{tpu_custom_call.1} parent=11 // pred_check_branch
          %247 = sbr.rel (%p245) target = $region28
        $region27: #{tpu_custom_call.1} parent=11 // pred_region
          _
        $region28: #{tpu_custom_call.1} parent=11 // pred_fallthru
          _
        // Predicated region
        $region29: #{tpu_custom_call.1} parent=11 // pred_check
          %p248 = pneg %p175
        $region30: #{tpu_custom_call.1} parent=11 // pred_check_branch
          %250 = sbr.rel (%p248) target = $region32
        $region31: #{tpu_custom_call.1} parent=11 // pred_region
          _
        $region32: #{tpu_custom_call.1} parent=11 // pred_fallthru
          _
      $region12: #{tpu_custom_call.1} parent=5 // pred_fallthru
        _
      %p251 = scmp.lt.s32.totalorder %s18, 2
      // Predicated region
      $region33: #{tpu_custom_call.1} parent=5 // pred_check
        %p252 = pneg %p251
      $region34: #{tpu_custom_call.1} parent=5 // pred_check_branch
        %254 = sbr.rel (%p252) target = $region36
      $region35: #{tpu_custom_call.1} parent=5 // pred_region
        // Predicated region
        $region37: #{tpu_custom_call.1} parent=35 // pred_check
          %p255 = pneg %p38
        $region38: #{tpu_custom_call.1} parent=35 // pred_check_branch
          %257 = sbr.rel (%p255) target = $region40
        $region39: #{tpu_custom_call.1} parent=35 // pred_region
          %p258 = scmp.lt.s32.totalorder %s18, 1
          %s259 = scalar_select %p258, %s18, 1
          %s260 = smul.addr %s259, 8
          %s261 = scalar_lea.vmem %s0, %s260
        $region40: #{tpu_custom_call.1} parent=35 // pred_fallthru
          _
        // Predicated region
        $region41: #{tpu_custom_call.1} parent=35 // pred_check
          %p262 = pneg %p64
        $region42: #{tpu_custom_call.1} parent=35 // pred_check_branch
          %264 = sbr.rel (%p262) target = $region44
        $region43: #{tpu_custom_call.1} parent=35 // pred_region
          %p265 = scmp.lt.s32.totalorder %s18, 1
          %s266 = scalar_select %p265, %s18, 1
          %s267 = smul.addr %s266, 8
          %s268 = scalar_lea.vmem %s1, %s267
        $region44: #{tpu_custom_call.1} parent=35 // pred_fallthru
          _
      $region36: #{tpu_custom_call.1} parent=5 // pred_fallthru
        _
      %p269 = scmp.le.s32.totalorder 1, %s18
      %p270 = scmp.lt.s32.totalorder %s18, 3
      %p271 = pnand %p269, %p270
      %p272 = pneg %p271
      // Predicated region
      $region45: #{tpu_custom_call.1} parent=5 // pred_check
        _
      $region46: #{tpu_custom_call.1} parent=5 // pred_check_branch
        %274 = sbr.rel (%p271) target = $region48
      $region47: #{tpu_custom_call.1} parent=5 // pred_region
        %s275 = ssub.s32 %s18, 1
        // Predicated region
        $region49: #{tpu_custom_call.1} parent=47 // pred_check
          %p276 = pneg %p91
        $region50: #{tpu_custom_call.1} parent=47 // pred_check_branch
          %278 = sbr.rel (%p276) target = $region52
        $region51: #{tpu_custom_call.1} parent=47 // pred_region
          %279 = dma.done [#allocation3], 512
        $region52: #{tpu_custom_call.1} parent=47 // pred_fallthru
          _
        // Predicated region
        $region53: #{tpu_custom_call.1} parent=47 // pred_check
          %p280 = pneg %p133
        $region54: #{tpu_custom_call.1} parent=47 // pred_check_branch
          %282 = sbr.rel (%p280) target = $region56
        $region55: #{tpu_custom_call.1} parent=47 // pred_region
          %283 = dma.done [#allocation6], 1024
        $region56: #{tpu_custom_call.1} parent=47 // pred_fallthru
          _
        %p284 = scmp.lt.s32.totalorder %s23, 1
        %s285 = scalar_select %p284, %s23, 1
        %s286 = smul.addr %s285, 8
        %s287 = scalar_lea.vmem %s0, %s286
        %p288 = pneg %p44
        %p289 = pneg %p41
        %p290 = scmp.lt.s32.totalorder %s23, 1
        %s291 = scalar_select %p290, %s23, 1
        %s292 = smul.addr %s291, 8
        %s293 = scalar_lea.vmem %s1, %s292
        %p294 = pneg %p70
        %p295 = pneg %p67
        %p296 = pneg %p91
        %p297 = pneg %p88
        %p298 = pneg %p112
        %p299 = pneg %p109
        %p300 = pneg %p133
        %p301 = pneg %p130
        %p302 = pneg %p154
        %p303 = pneg %p151
        %p304 = pneg %p175
        %p305 = pneg %p172
        %p306 = pneg %p201
        %p307 = pneg %p198
        %s308 = sand.u32 %s188, 1
        %s309 = scalar_lea.sflag [#allocation4], %s308
        %s310 = sand.u32 %s188, 1
        %s311 = smul.addr %s310, 8
        %s312 = scalar_lea.vmem [#allocation7], %s311
        %p313 = scmp.lt.s32.totalorder %s23, 1
        %s314 = scalar_select %p313, %s23, 1
        %s315 = smul.addr %s314, 8
        %s316 = scalar_lea.vmem %s0, %s315
        %p317 = scmp.lt.s32.totalorder %s23, 1
        %s318 = scalar_select %p317, %s23, 1
        %s319 = smul.addr %s318, 8
        %s320 = scalar_lea.vmem %s1, %s319
        %v321 = vld [vmem:[%s316] sm:$0xff]
        %v322 = vld [vmem:[#allocation2] sm:$0xff]
        %v323 = vld [vmem:[#allocation2 + $0x8] sm:$0xff]
        %v324 = vld [vmem:[#allocation2 + $0x10] sm:$0xff]
        %v325 = vld [vmem:[#allocation2 + $0x18] sm:$0xff]
        %v326 = vld [vmem:[%s3] sm:$0x1]
        %v328 = vlaneseq
        %v329 = vshrl.u32 %v328, 7
        %v330 = vsub.s32 0, %v329
        %v331 = vrot.slane %v326, %v330
        %vm333 = vcmask 261120
        %v335 = vsel %vm333, %v321, 0
        %337 = vmatprep.subr.mxu0 0.0
        %338 = vmatpush1.msra.mxu0 0.0
        %339 = vmatprep.subr.mxu0 0.0
        %340 = vmatpush1.msra.mxu0 0.0
        %341 = vmatprep.subr.mxu0 0.0
        %342 = vmatpush1.msra.mxu0 0.0
        %343 = vmatprep.subr.mxu0 0.0
        %344 = vmatpush1.msra.mxu0 0.0
        %345 = vmatprep.subr.mxu0 0.0
        %346 = vmatpush1.msra.mxu0 0.0
        %347 = vmatprep.subr.mxu0 0.0
        %348 = vmatpush1.msra.mxu0 0.0
        %349 = vmatprep.subr.mxu0 0.0
        %350 = vmatpush1.msra.mxu0 0.0
        %351 = vmatprep.subr.mxu0 0.0
        %352 = vmatpush1.msra.mxu0 0.0
        %353 = vmatprep.subr.mxu0 0.0
        %354 = vmatpush1.msra.mxu0 0.0
        %355 = vmatprep.subr.mxu0 0.0
        %356 = vmatpush1.msra.mxu0 0.0
        %357 = vmatprep.subr.mxu0 0.0
        %358 = vmatpush1.msra.mxu0 0.0
        %359 = vmatprep.subr.mxu0 0.0
        %360 = vmatpush1.msra.mxu0 0.0
        %361 = vmatprep.subr.mxu0 0.0
        %362 = vmatpush1.msra.mxu0 %v325
        %363 = vmatprep.subr.mxu0 0.0
        %364 = vmatpush1.msra.mxu0 %v324
        %365 = vmatprep.subr.mxu0 0.0
        %366 = vmatpush1.msra.mxu0 %v323
        %367 = vmatprep.subr.mxu0 0.0
        %368 = vmatpush1.msra.mxu0 %v322
        %369 = vmatprep.subr.mxu0 0.0
        %370 = vmatpush2.msra.mxu0 0.0
        %371 = vmatprep.subr.mxu0 0.0
        %372 = vmatpush2.msra.mxu0 0.0
        %373 = vmatprep.subr.mxu0 0.0
        %374 = vmatpush2.msra.mxu0 0.0
        %375 = vmatprep.subr.mxu0 0.0
        %376 = vmatpush2.msra.mxu0 0.0
        %377 = vmatprep.subr.mxu0 0.0
        %378 = vmatpush2.msra.mxu0 0.0
        %379 = vmatprep.subr.mxu0 0.0
        %380 = vmatpush2.msra.mxu0 0.0
        %381 = vmatprep.subr.mxu0 0.0
        %382 = vmatpush2.msra.mxu0 0.0
        %383 = vmatprep.subr.mxu0 0.0
        %384 = vmatpush2.msra.mxu0 0.0
        %385 = vmatprep.subr.mxu0 0.0
        %386 = vmatpush2.msra.mxu0 0.0
        %387 = vmatprep.subr.mxu0 0.0
        %388 = vmatpush2.msra.mxu0 0.0
        %389 = vmatprep.subr.mxu0 0.0
        %390 = vmatpush2.msra.mxu0 0.0
        %391 = vmatprep.subr.mxu0 0.0
        %392 = vmatpush2.msra.mxu0 0.0
        %393 = vmatprep.subr.mxu0 0.0
        %394 = vmatpush2.msra.mxu0 0.0
        %395 = vmatprep.subr.mxu0 0.0
        %396 = vmatpush2.msra.mxu0 0.0
        %397 = vmatprep.subr.mxu0 0.0
        %398 = vmatpush2.msra.mxu0 0.0
        %399 = vmatprep.subr.mxu0 0.0
        %400 = vmatpush2.msra.mxu0 0.0
        %401 = vmatprep.mubr.f32.mxu0 0.0
        %402 = vmatmul.mubr.f32.gmra.mxu0 %v335
        %v403 = vpop.f32.mrf.mxu0
        %v404 = vadd.f32 %v331, %v403
        %v405 = vpop.f32.mrf.mxu0
        %406 = vdwg.mxu0
        %v407 = vmax.f32 %v404, 0.0
        %v408 = vld [vmem:[#allocation5] sm:$0xff]
        %v409 = vld [vmem:[#allocation5 + $0x8] sm:$0xff]
        %v410 = vld [vmem:[#allocation5 + $0x10] sm:$0xff]
        %v411 = vld [vmem:[#allocation5 + $0x18] sm:$0xff]
        %v412 = vld [vmem:[#allocation5 + $0x20] sm:$0xff]
        %v413 = vld [vmem:[#allocation5 + $0x28] sm:$0xff]
        %v414 = vld [vmem:[#allocation5 + $0x30] sm:$0xff]
        %v415 = vld [vmem:[#allocation5 + $0x38] sm:$0xff]
        %v416 = vld [vmem:[%s320] sm:$0xff]
        %v417 = vld [vmem:[%s5] sm:$0x1]
        %419 = vset.pattern.permute.xlu0 0
        %420 = vperm.xlu0 %419, %v416
        %v421 = vpop.permute.xlu0 %420
        %v424 = vlaneseq
        %v425 = vshrl.u32 %v424, 7
        %v426 = vsub.s32 0, %v425
        %v427 = vrot.slane %v417, %v426
        %v429 = vmul.f32 %v421, %v427
        %vm430 = vcmask 523264
        %v432 = vsel %vm430, %v407, 0
        %434 = vmatprep.subr.mxu0 0.0
        %435 = vmatpush1.msra.mxu0 0.0
        %436 = vmatprep.subr.mxu0 0.0
        %437 = vmatpush1.msra.mxu0 0.0
        %438 = vmatprep.subr.mxu0 0.0
        %439 = vmatpush1.msra.mxu0 0.0
        %440 = vmatprep.subr.mxu0 0.0
        %441 = vmatpush1.msra.mxu0 0.0
        %442 = vmatprep.subr.mxu0 0.0
        %443 = vmatpush1.msra.mxu0 0.0
        %444 = vmatprep.subr.mxu0 0.0
        %445 = vmatpush1.msra.mxu0 0.0
        %446 = vmatprep.subr.mxu0 0.0
        %447 = vmatpush1.msra.mxu0 0.0
        %448 = vmatprep.subr.mxu0 0.0
        %449 = vmatpush1.msra.mxu0 0.0
        %450 = vmatprep.subr.mxu0 0.0
        %451 = vmatpush1.msra.mxu0 %v415
        %452 = vmatprep.subr.mxu0 0.0
        %453 = vmatpush1.msra.mxu0 %v414
        %454 = vmatprep.subr.mxu0 0.0
        %455 = vmatpush1.msra.mxu0 %v413
        %456 = vmatprep.subr.mxu0 0.0
        %457 = vmatpush1.msra.mxu0 %v412
        %458 = vmatprep.subr.mxu0 0.0
        %459 = vmatpush1.msra.mxu0 %v411
        %460 = vmatprep.subr.mxu0 0.0
        %461 = vmatpush1.msra.mxu0 %v410
        %462 = vmatprep.subr.mxu0 0.0
        %463 = vmatpush1.msra.mxu0 %v409
        %464 = vmatprep.subr.mxu0 0.0
        %465 = vmatpush1.msra.mxu0 %v408
        %466 = vmatprep.subr.mxu0 0.0
        %467 = vmatpush2.msra.mxu0 0.0
        %468 = vmatprep.subr.mxu0 0.0
        %469 = vmatpush2.msra.mxu0 0.0
        %470 = vmatprep.subr.mxu0 0.0
        %471 = vmatpush2.msra.mxu0 0.0
        %472 = vmatprep.subr.mxu0 0.0
        %473 = vmatpush2.msra.mxu0 0.0
        %474 = vmatprep.subr.mxu0 0.0
        %475 = vmatpush2.msra.mxu0 0.0
        %476 = vmatprep.subr.mxu0 0.0
        %477 = vmatpush2.msra.mxu0 0.0
        %478 = vmatprep.subr.mxu0 0.0
        %479 = vmatpush2.msra.mxu0 0.0
        %480 = vmatprep.subr.mxu0 0.0
        %481 = vmatpush2.msra.mxu0 0.0
        %482 = vmatprep.subr.mxu0 0.0
        %483 = vmatpush2.msra.mxu0 0.0
        %484 = vmatprep.subr.mxu0 0.0
        %485 = vmatpush2.msra.mxu0 0.0
        %486 = vmatprep.subr.mxu0 0.0
        %487 = vmatpush2.msra.mxu0 0.0
        %488 = vmatprep.subr.mxu0 0.0
        %489 = vmatpush2.msra.mxu0 0.0
        %490 = vmatprep.subr.mxu0 0.0
        %491 = vmatpush2.msra.mxu0 0.0
        %492 = vmatprep.subr.mxu0 0.0
        %493 = vmatpush2.msra.mxu0 0.0
        %494 = vmatprep.subr.mxu0 0.0
        %495 = vmatpush2.msra.mxu0 0.0
        %496 = vmatprep.subr.mxu0 0.0
        %497 = vmatpush2.msra.mxu0 0.0
        %498 = vmatprep.mubr.f32.mxu0 0.0
        %499 = vmatmul.mubr.f32.gmra.mxu0 %v432
        %v500 = vpop.f32.mrf.mxu0
        %v501 = vadd.f32 %v429, %v500
        %v502 = vpop.f32.mrf.mxu0
        %503 = vdwg.mxu0
        %v504 = vld [vmem:[%s6] sm:$0x1]
        %v506 = vlaneseq
        %v507 = vshrl.u32 %v506, 7
        %v508 = vsub.s32 0, %v507
        %v509 = vrot.slane %v504, %v508
        %v511 = vadd.f32 %v501, %v509
        %v512 = vsub.f32 0.0, %v511
        %v513 = vmul.f32 %v512, 1.442695
        %v514 = vpow.pop %v513
        %v515 = vadd.f32 %v514, 1.0
        %v516 = vrcp.pop %v515
        %517 = vst [vmem:[%s312] sm:$0xff] %v516
        %s518 = sand.u32 %s188, 1
        %s519 = scalar_lea.sflag [#allocation4], %s518
        %s520 = sand.u32 %s188, 1
        %s521 = smul.addr %s520, 8
        %s522 = scalar_lea.vmem [#allocation7], %s521
        // Predicated region
        $region57: #{tpu_custom_call.1} parent=47 // pred_check
          %p523 = pneg %p198
        $region58: #{tpu_custom_call.1} parent=47 // pred_check_branch
          %525 = sbr.rel (%p523) target = $region60
        $region59: #{tpu_custom_call.1} parent=47 // pred_region
          %s527 = ssub.s32 128, 128
          %528 = vsyncadd %s519, %s527
          %s529 = smul.addr %s23, 128
          %s530 = scalar_lea.hbm %s7, %s529
          %s532 = sshll.u32 %s522, 4
          %s533 = int_to_ptr.vmem [resolvable:$true] %s532
          %535 = dma.vmem_to_hbm [thread:$0]  %s533, 128, %s530, %s519
        $region60: #{tpu_custom_call.1} parent=47 // pred_fallthru
          _
      $region48: #{tpu_custom_call.1} parent=5 // pred_fallthru
        _
      %p536 = scmp.le.s32.totalorder 2, %s18
      // Predicated region
      $region61: #{tpu_custom_call.1} parent=5 // pred_check
        %p537 = pneg %p536
      $region62: #{tpu_custom_call.1} parent=5 // pred_check_branch
        %539 = sbr.rel (%p537) target = $region64
      $region63: #{tpu_custom_call.1} parent=5 // pred_region
        %s540 = ssub.s32 %s18, 2
        // Predicated region
        $region65: #{tpu_custom_call.1} parent=63 // pred_check
          %p541 = pneg %p204
        $region66: #{tpu_custom_call.1} parent=63 // pred_check_branch
          %543 = sbr.rel (%p541) target = $region68
        $region67: #{tpu_custom_call.1} parent=63 // pred_region
          %s544 = sand.u32 %s189, 1
          %s545 = scalar_lea.sflag [#allocation4], %s544
          %s546 = sand.u32 %s189, 1
          %s547 = smul.addr %s546, 8
          %s548 = scalar_lea.vmem [#allocation7], %s547
          %549 = dma.done %s545, 128
        $region68: #{tpu_custom_call.1} parent=63 // pred_fallthru
          _
      $region64: #{tpu_custom_call.1} parent=5 // pred_fallthru
        _
    $region6: #{tpu_custom_call.1} parent=1 // loop_footer
      %s22 = sadd.s32 1, %s18
    $region7: #{tpu_custom_call.1} parent=1 // loop_footer_branch
      %17 = sbr.rel target = $region3
    $region8: #{tpu_custom_call.1} parent=1 // loop_exit
      _
    %550 = vsyncpa [#allocation3], 1
    %s551 = scalar_lea.sflag [#allocation3], 1
    %552 = vsyncpa %s551, 1
    %553 = vsyncpa [#allocation6], 1
    %554 = vsyncpa [#allocation4], 1
    %s555 = scalar_lea.sflag [#allocation4], 1
    %556 = vsyncpa %s555, 1

</llo_original>
